<compile_context>
chip_gen: v5e
topology: v5e:2x2
jax: 0.10.0
libtpu: 0.0.40
codegen_flags: <defaults>
</compile_context>

<pallas_src>
import functools

import jax
import jax.numpy as jnp
from jax.experimental import pallas as pl
from jax.experimental.pallas import tpu as pltpu

LANE = 128              # lane width (last-dim tile)
MAX_TILE_ROWS = 4096    # sublane rows per grid step (sweep 2048/4096); 4096 keeps the
                        # per-step DMA big enough to hide the ~0.35 us step cost even
                        # on v7x's ~3.2 TB/s HBM, and fits all generations' VMEM.
MIN_PALLAS_ELEMS = 1 << 17   # below ~1.5 MB of traffic a fused XLA reduction wins


def _round_up(x, m):
    return (x + m - 1) // m * m


def _num_tensorcores():
    """Best-effort TensorCores-per-chip: 2 on v7x-class chips, else 1 (v5e/v6e)."""
    try:
        info = pltpu.get_tpu_info()
        for attr in ("num_cores", "core_count", "num_tensorcores", "tensorcores"):
            v = getattr(info, attr, None)
            if isinstance(v, int) and 1 <= v <= 8:
                return v
    except Exception:
        pass
    try:
        kind = jax.devices()[0].device_kind.lower().replace(" ", "")
        if "v7" in kind or kind.startswith("tpu7"):
            return 2
    except Exception:
        pass
    return 1


def _wmse_kernel(p_ref, t_ref, w_ref, o_ref, *, steps_per_core, tile_rows, valid_rows):
    c = pl.program_id(0)   # core split (CORE_PARALLEL on multi-TC chips)
    k = pl.program_id(1)   # streaming reduction step (arbitrary)

    @pl.when(k == 0)
    def _():
        o_ref[...] = jnp.zeros_like(o_ref)

    # Global (unclamped) block index; the BlockSpec index_map clamps the address, so a
    # surplus step just re-reads the last block and is fully masked below.
    g = c * steps_per_core + k
    row0 = g * tile_rows

    # Hot loop: 3 vector loads + 3 VALU ops per vreg (memory-bound by design).
    d = p_ref[...].astype(jnp.float32) - t_ref[...].astype(jnp.float32)
    contrib = w_ref[...].astype(jnp.float32) * d * d

    tile_fully_in_bounds = row0 + tile_rows <= valid_rows

    @pl.when(tile_fully_in_bounds)
    def _():
        # Pure VALU vreg-add tree down to one (8, LANE) vreg, accumulated into the
        # resident output block (no full-tile VMEM accumulator).
        red = contrib.reshape(tile_rows // 8, 8, LANE).sum(axis=0)
        o_ref[...] += red[None]

    @pl.when(jnp.logical_not(tile_fully_in_bounds))
    def _():
        # Partial last tile / clamped surplus step: mask OOB rows before reducing.
        # The select discards any garbage (NaN/Inf) read past the array edge.
        row_ids = row0 + jax.lax.broadcasted_iota(jnp.int32, (tile_rows, LANE), 0)
        masked = jnp.where(row_ids < valid_rows, contrib, 0.0)
        red = masked.reshape(tile_rows // 8, 8, LANE).sum(axis=0)
        o_ref[...] += red[None]


def _pallas_partials(p2, t2, w2, rows, ncores, max_tile_rows):
    """Run the streaming kernel; returns (ncores, 8, LANE) f32 partial sums."""
    tile_rows = min(max_tile_rows, _round_up(rows, 8))
    total_blocks = (rows + tile_rows - 1) // tile_rows
    ncores = max(1, min(ncores, total_blocks))   # no surplus cores for small inputs
    steps_per_core = (total_blocks + ncores - 1) // ncores
    grid = (ncores, steps_per_core)

    def in_map(c, k):
        # Clamp so surplus steps never address past the last real block.
        return (jnp.minimum(c * steps_per_core + k, total_blocks - 1), 0)

    in_spec = pl.BlockSpec((tile_rows, LANE), in_map)

    kernel = functools.partial(
        _wmse_kernel,
        steps_per_core=steps_per_core,
        tile_rows=tile_rows,
        valid_rows=rows,
    )

    # Explicit VMEM budget: 3 inputs x 2 pipeline buffers x tile bytes, plus headroom
    # for elementwise temporaries and the tiny accumulator/output. Safe on all of
    # v5e (128 MiB physical), v6e (128 MiB), v7x (64 MiB per TC).
    in_itemsize = sum(x.dtype.itemsize for x in (p2, t2, w2))
    stream_bytes = 2 * tile_rows * LANE * in_itemsize
    temp_bytes = 4 * tile_rows * LANE * 4
    vmem_limit = int(min(max(stream_bytes + temp_bytes + (2 << 20), 32 << 20), 56 << 20))

    if ncores > 1:
        # Actually shard the leading axis across TensorCores (v7x); plain "parallel"
        # does not change codegen.
        dim_sem = (pltpu.CORE_PARALLEL, pltpu.ARBITRARY)
    else:
        dim_sem = (pltpu.ARBITRARY, pltpu.ARBITRARY)

    bytes_in = sum(x.size * x.dtype.itemsize for x in (p2, t2, w2))
    cost = pl.CostEstimate(
        flops=int(4 * rows * LANE),
        transcendentals=0,
        bytes_accessed=int(bytes_in + ncores * 8 * LANE * 4),
    )

    return pl.pallas_call(
        kernel,
        out_shape=jax.ShapeDtypeStruct((ncores, 8, LANE), jnp.float32),
        grid=grid,
        in_specs=[in_spec, in_spec, in_spec],
        out_specs=pl.BlockSpec((1, 8, LANE), lambda c, k: (c, 0, 0)),
        compiler_params=pltpu.CompilerParams(
            dimension_semantics=dim_sem,
            vmem_limit_bytes=vmem_limit,
        ),
        cost_estimate=cost,
    )(p2, t2, w2)


def weighted_mse_loss(prediction, target, weight, *,
                      min_pallas_elems=MIN_PALLAS_ELEMS,
                      max_tile_rows=MAX_TILE_ROWS,
                      ncores=None):
    """JAX/Pallas equivalent of torch.mean(weight * (prediction - target) ** 2).

    `weight.detach()` is a forward no-op, so weight is used as-is. Returns f32 scalar.
    """
    assert prediction.shape == target.shape == weight.shape
    n = prediction.size

    if n < min_pallas_elems:
        # Tiny inputs: launch + pipeline ramp dominate; let XLA fuse the reduction.
        d = prediction.astype(jnp.float32) - target.astype(jnp.float32)
        return jnp.mean(weight.astype(jnp.float32) * d * d)

    flats = [jnp.ravel(x) for x in (prediction, target, weight)]
    rem = n % LANE
    n_main = n - rem

    tail_sum = None
    if rem:
        # Stream only the lane-aligned prefix through the kernel; the <128-element
        # tail is a tiny fused XLA reduction folded into the final combine (avoids
        # padding all three arrays).
        # TODO(synk): eagerly the prefix slice may still copy; under jit it fuses.
        tails = [x[n_main:] for x in flats]
        dt = tails[0].astype(jnp.float32) - tails[1].astype(jnp.float32)
        tail_sum = jnp.sum(tails[2].astype(jnp.float32) * dt * dt)
        if n_main == 0:
            return tail_sum / n
        flats = [x[:n_main] for x in flats]

    rows = n_main // LANE
    p2, t2, w2 = (x.reshape(rows, LANE) for x in flats)

    n_tc = ncores if ncores is not None else _num_tensorcores()
    if n_tc > 1:
        try:
            partials = jax.block_until_ready(
                _pallas_partials(p2, t2, w2, rows, n_tc, max_tile_rows))
        except Exception:
            # Safe fallback if the CORE_PARALLEL 2-TensorCore split is rejected on
            # this chip / runtime: rerun single-core (correct, just slower).
            partials = _pallas_partials(p2, t2, w2, rows, 1, max_tile_rows)
    else:
        partials = _pallas_partials(p2, t2, w2, rows, 1, max_tile_rows)

    total = jnp.sum(partials, dtype=jnp.float32)
    if tail_sum is not None:
        total = total + tail_sum
    return total / n


if __name__ == "__main__":
    key = jax.random.PRNGKey(0)

    def ref_loss(p, t, w):
        d = p.astype(jnp.float32) - t.astype(jnp.float32)
        return jnp.mean(w.astype(jnp.float32) * d * d)

    # Small shapes (forced through the kernel path with min_pallas_elems=0):
    #   1) NCHW shape from the module spec: single-block path.
    #   2) larger shape with a small max_tile_rows override: multi-step accumulation,
    #      partial last tile masking, clamped surplus step (if 2 cores are detected).
    #   3) lane-unaligned size: aligned prefix through the kernel + XLA tail.
    #   4) bf16 inputs: native-dtype streaming with in-kernel f32 accumulation.
    cases = [
        ((2, 4, 16, 16), jnp.float32, MAX_TILE_ROWS),
        ((4, 5, 110, 128), jnp.float32, 64),
        ((3, 7, 11, 13), jnp.float32, MAX_TILE_ROWS),
        ((2, 4, 16, 16), jnp.bfloat16, MAX_TILE_ROWS),
    ]
    for shape, dtype, mtr in cases:
        k1, k2, k3, key = jax.random.split(key, 4)
        prediction = jax.random.normal(k1, shape, dtype=jnp.float32).astype(dtype)
        target = jax.random.normal(k2, shape, dtype=jnp.float32).astype(dtype)
        weight = jax.random.uniform(k3, shape, dtype=jnp.float32).astype(dtype)

        loss = weighted_mse_loss(prediction, target, weight,
                                 min_pallas_elems=0, max_tile_rows=mtr)
        jax.block_until_ready(loss)

        ref = ref_loss(prediction, target, weight)
        assert jnp.allclose(loss, ref, rtol=2e-4, atol=1e-6), (shape, dtype, loss, ref)

    print("KERNEL_OK")
</pallas_src>

<mosaic_0001>
module attributes {stable_mosaic.version = 11 : i64} {
  func.func @_wmse_kernel(%arg0: i32, %arg1: i32, %arg2: memref<16x128xf32, #tpu.memory_space<vmem>>, %arg3: memref<16x128xf32, #tpu.memory_space<vmem>>, %arg4: memref<16x128xf32, #tpu.memory_space<vmem>>, %arg5: memref<1x8x128xf32, #tpu.memory_space<vmem>>) attributes {dimension_semantics = [#tpu.dimension_semantics<arbitrary>, #tpu.dimension_semantics<arbitrary>], iteration_bounds = array<i64: 1, 1>, scalar_prefetch = 0 : i64, scratch_operands = 0 : i64, tpu.core_type = #tpu.core_type<tc>, window_params = [{transform_indices = @transform_0, window_bounds = array<i64: 16, 128>}, {transform_indices = @transform_1, window_bounds = array<i64: 16, 128>}, {transform_indices = @transform_2, window_bounds = array<i64: 16, 128>}, {transform_indices = @transform_3, window_bounds = array<i64: 1, 8, 128>}]} {
    %c0_i32 = arith.constant 0 : i32
    %0 = arith.cmpi eq, %arg1, %c0_i32 : i32
    %1 = arith.extui %0 : i1 to i32
    %c0_i32_0 = arith.constant 0 : i32
    %2 = arith.cmpi ne, %1, %c0_i32_0 : i32
    scf.if %2 {
      %cst = arith.constant 0.000000e+00 : f32
      %19 = vector.broadcast %cst : f32 to vector<1x8x128xf32>
      %c0_10 = arith.constant 0 : index
      %c0_11 = arith.constant 0 : index
      %c0_12 = arith.constant 0 : index
      %20 = vector.load %arg5[%c0_10, %c0_11, %c0_12] : memref<1x8x128xf32, #tpu.memory_space<vmem>>, vector<1x8x128xf32>
      tpu.vector_store %arg5[%c0_10, %c0_11, %c0_12], %19 {strides = array<i32>} : memref<1x8x128xf32, #tpu.memory_space<vmem>>, vector<1x8x128xf32>,
    } else {
    }
    %c1_i32 = arith.constant 1 : i32
    %3 = arith.muli %arg0, %c1_i32 : i32
    %4 = arith.addi %3, %arg1 : i32
    %c16_i32 = arith.constant 16 : i32
    %5 = arith.muli %4, %c16_i32 : i32
    %c0 = arith.constant 0 : index
    %c0_1 = arith.constant 0 : index
    %6 = vector.load %arg2[%c0, %c0_1] : memref<16x128xf32, #tpu.memory_space<vmem>>, vector<16x128xf32>
    %c0_2 = arith.constant 0 : index
    %c0_3 = arith.constant 0 : index
    %7 = vector.load %arg3[%c0_2, %c0_3] : memref<16x128xf32, #tpu.memory_space<vmem>>, vector<16x128xf32>
    %8 = arith.subf %6, %7 : vector<16x128xf32>
    %c0_4 = arith.constant 0 : index
    %c0_5 = arith.constant 0 : index
    %9 = vector.load %arg4[%c0_4, %c0_5] : memref<16x128xf32, #tpu.memory_space<vmem>>, vector<16x128xf32>
    %10 = arith.mulf %9, %8 : vector<16x128xf32>
    %11 = arith.mulf %10, %8 : vector<16x128xf32>
    %c16_i32_6 = arith.constant 16 : i32
    %12 = arith.addi %5, %c16_i32_6 : i32
    %c16_i32_7 = arith.constant 16 : i32
    %13 = arith.cmpi sle, %12, %c16_i32_7 : i32
    %14 = arith.extui %13 : i1 to i32
    %c0_i32_8 = arith.constant 0 : i32
    %15 = arith.cmpi ne, %14, %c0_i32_8 : i32
    scf.if %15 {
      %19 = vector.shape_cast %11 : vector<16x128xf32> to vector<2x8x128xf32>
      %cst = arith.constant dense<0.000000e+00> : vector<8x128xf32>
      %20 = vector.multi_reduction <add>, %19, %cst [0] : vector<2x8x128xf32> to vector<8x128xf32>
      %c0_10 = arith.constant 0 : index
      %c0_11 = arith.constant 0 : index
      %c0_12 = arith.constant 0 : index
      %21 = vector.load %arg5[%c0_10, %c0_11, %c0_12] : memref<1x8x128xf32, #tpu.memory_space<vmem>>, vector<1x8x128xf32>
      %22 = vector.shape_cast %20 : vector<8x128xf32> to vector<1x8x128xf32>
      %23 = arith.addf %21, %22 : vector<1x8x128xf32>
      %c0_13 = arith.constant 0 : index
      %c0_14 = arith.constant 0 : index
      %c0_15 = arith.constant 0 : index
      %24 = vector.load %arg5[%c0_13, %c0_14, %c0_15] : memref<1x8x128xf32, #tpu.memory_space<vmem>>, vector<1x8x128xf32>
      tpu.vector_store %arg5[%c0_13, %c0_14, %c0_15], %23 {strides = array<i32>} : memref<1x8x128xf32, #tpu.memory_space<vmem>>, vector<1x8x128xf32>,
    } else {
    }
    %true = arith.constant true
    %16 = arith.xori %13, %true : i1
    %17 = arith.extui %16 : i1 to i32
    %c0_i32_9 = arith.constant 0 : i32
    %18 = arith.cmpi ne, %17, %c0_i32_9 : i32
    scf.if %18 {
      %19 = tpu.iota {dimensions = array<i32: 0>} : vector<16x128xi32>
      %20 = vector.broadcast %5 : i32 to vector<16x128xi32>
      %21 = arith.addi %20, %19 : vector<16x128xi32>
      %c16_i32_10 = arith.constant 16 : i32
      %22 = vector.broadcast %c16_i32_10 : i32 to vector<16x128xi32>
      %23 = arith.cmpi slt, %21, %22 : vector<16x128xi32>
      %cst = arith.constant 0.000000e+00 : f32
      %24 = vector.broadcast %cst : f32 to vector<16x128xf32>
      %25 = arith.select %23, %11, %24 : vector<16x128xi1>, vector<16x128xf32>
      %26 = vector.shape_cast %25 : vector<16x128xf32> to vector<2x8x128xf32>
      %cst_11 = arith.constant dense<0.000000e+00> : vector<8x128xf32>
      %27 = vector.multi_reduction <add>, %26, %cst_11 [0] : vector<2x8x128xf32> to vector<8x128xf32>
      %c0_12 = arith.constant 0 : index
      %c0_13 = arith.constant 0 : index
      %c0_14 = arith.constant 0 : index
      %28 = vector.load %arg5[%c0_12, %c0_13, %c0_14] : memref<1x8x128xf32, #tpu.memory_space<vmem>>, vector<1x8x128xf32>
      %29 = vector.shape_cast %27 : vector<8x128xf32> to vector<1x8x128xf32>
      %30 = arith.addf %28, %29 : vector<1x8x128xf32>
      %c0_15 = arith.constant 0 : index
      %c0_16 = arith.constant 0 : index
      %c0_17 = arith.constant 0 : index
      %31 = vector.load %arg5[%c0_15, %c0_16, %c0_17] : memref<1x8x128xf32, #tpu.memory_space<vmem>>, vector<1x8x128xf32>
      tpu.vector_store %arg5[%c0_15, %c0_16, %c0_17], %30 {strides = array<i32>} : memref<1x8x128xf32, #tpu.memory_space<vmem>>, vector<1x8x128xf32>,
    } else {
    }
    return
  }
  func.func @transform_0(%arg0: i32, %arg1: i32) -> (i32, i32) {
    %c1_i32 = arith.constant 1 : i32
    %0 = arith.muli %arg0, %c1_i32 : i32
    %1 = arith.addi %0, %arg1 : i32
    %c0_i32 = arith.constant 0 : i32
    %2 = arith.minsi %1, %c0_i32 : i32
    %c0_i32_0 = arith.constant 0 : i32
    %c0_i32_1 = arith.constant 0 : i32
    return %2, %c0_i32_0 : i32, i32
  }
  func.func @transform_1(%arg0: i32, %arg1: i32) -> (i32, i32) {
    %c1_i32 = arith.constant 1 : i32
    %0 = arith.muli %arg0, %c1_i32 : i32
    %1 = arith.addi %0, %arg1 : i32
    %c0_i32 = arith.constant 0 : i32
    %2 = arith.minsi %1, %c0_i32 : i32
    %c0_i32_0 = arith.constant 0 : i32
    %c0_i32_1 = arith.constant 0 : i32
    return %2, %c0_i32_0 : i32, i32
  }
  func.func @transform_2(%arg0: i32, %arg1: i32) -> (i32, i32) {
    %c1_i32 = arith.constant 1 : i32
    %0 = arith.muli %arg0, %c1_i32 : i32
    %1 = arith.addi %0, %arg1 : i32
    %c0_i32 = arith.constant 0 : i32
    %2 = arith.minsi %1, %c0_i32 : i32
    %c0_i32_0 = arith.constant 0 : i32
    %c0_i32_1 = arith.constant 0 : i32
    return %2, %c0_i32_0 : i32, i32
  }
  func.func @transform_3(%arg0: i32, %arg1: i32) -> (i32, i32, i32) {
    %c0_i32 = arith.constant 0 : i32
    %c0_i32_0 = arith.constant 0 : i32
    %c0_i32_1 = arith.constant 0 : i32
    return %arg0, %c0_i32, %c0_i32_0 : i32, i32, i32
  }
}

</mosaic_0001>

<llo_original>
// kernel: tpu_custom_call.1
$region0: #{tpu_custom_call.1}
  #allocation0 [shape = 'u32[]', space=smem, size = 0x4, offset = 0x4, fixed_abs, tag = 'smem constant byte address 0x4 - core index']
  #allocation1 [shape = 'u32[72,128]{1,0:T(1,128)}', space=vmem, size = 0x9000, scoped, tag = 'internal scratch']
  %s0 = inlined_call_operand.hbm [shape: f32[16,128], index: 0, kind: input, shape index: {}]
  %s1 = inlined_call_operand.hbm [shape: f32[16,128], index: 1, kind: input, shape index: {}]
  %s2 = inlined_call_operand.hbm [shape: f32[16,128], index: 2, kind: input, shape index: {}]
  %s3 = inlined_call_operand.hbm [shape: f32[1,8,128], index: 3, kind: output, shape index: {}]
  %s4 = sld [smem:[#allocation0]]
  $region46: #{tpu_custom_call.1} parent=0
    _
  %s6 = ssub.s32 1, %s4
  %s7 = scalar_select 0, %s6, %s4
  $region1: #{tpu_custom_call.1} parent=0
    #allocation2 [shape = 'u8[8192]{0}', space=vmem, size = 0x2000, scoped, tag = 'input window, operand 0, single buffered']
    #allocation3 [shape = 's32[1]{0}', space=sflag, size = 0x4, scoped, tag = 'scoped memory for tpu_custom_call.1']
    #allocation4 [shape = 's32[1]{0}', space=sflag, size = 0x4, scoped, tag = 'scoped memory for tpu_custom_call.1']
    #allocation5 [shape = 'u8[8192]{0}', space=vmem, size = 0x2000, scoped, tag = 'input window, operand 1, single buffered']
    #allocation6 [shape = 's32[1]{0}', space=sflag, size = 0x4, scoped, tag = 'scoped memory for tpu_custom_call.1']
    #allocation7 [shape = 'u8[8192]{0}', space=vmem, size = 0x2000, scoped, tag = 'input window, operand 2, single buffered']
    #allocation8 [shape = 'u8[4096]{0}', space=vmem, size = 0x1000, scoped, tag = 'output window, operand 0, single buffered']
    %8 = vsyncpa [#allocation3], 0
    %9 = vsyncpa [#allocation6], 0
    %10 = vsyncpa [#allocation4], 0
    // Predicated region
    $region2: #{tpu_custom_call.1} parent=1 // pred_check
      _
    $region3: #{tpu_custom_call.1} parent=1 // pred_check_branch
      %12 = sbr.rel (0) target = $region5
    $region4: #{tpu_custom_call.1} parent=1 // pred_region
      %s13 = sadd.s32 0, 0
      %p14 = scmp.lt.s32.totalorder %s13, 0
      %s15 = scalar_select %p14, %s13, 0
      %s16 = smul.u32 2, %s15
      %18 = vsyncadd [#allocation3], 0
      %s19 = smul.addr %s16, 8
      %s20 = scalar_lea.hbm %s0, %s19
      %s21 = sshll.u32 %s20, 4
      %s22 = int_to_ptr.hbm [resolvable:$true] %s21
      %s23 = sshll.u32 [#allocation2], 4
      %s24 = int_to_ptr.vmem [resolvable:$true] %s23
      %29 = dma.hbm_to_vmem [thread:$0]  %s22, 256, %s24, [#allocation3], 128, 128, 8
    $region5: #{tpu_custom_call.1} parent=1 // pred_fallthru
      _
    // Predicated region
    $region6: #{tpu_custom_call.1} parent=1 // pred_check
      _
    $region7: #{tpu_custom_call.1} parent=1 // pred_check_branch
      %31 = sbr.rel (0) target = $region9
    $region8: #{tpu_custom_call.1} parent=1 // pred_region
      %s32 = sadd.s32 0, 0
      %p33 = scmp.lt.s32.totalorder %s32, 0
      %s34 = scalar_select %p33, %s32, 0
      %s35 = smul.u32 2, %s34
      %37 = vsyncadd [#allocation6], 0
      %s38 = smul.addr %s35, 8
      %s39 = scalar_lea.hbm %s1, %s38
      %s40 = sshll.u32 %s39, 4
      %s41 = int_to_ptr.hbm [resolvable:$true] %s40
      %s42 = sshll.u32 [#allocation5], 4
      %s43 = int_to_ptr.vmem [resolvable:$true] %s42
      %48 = dma.hbm_to_vmem [thread:$0]  %s41, 256, %s43, [#allocation6], 128, 128, 8
    $region9: #{tpu_custom_call.1} parent=1 // pred_fallthru
      _
    // Predicated region
    $region10: #{tpu_custom_call.1} parent=1 // pred_check
      _
    $region11: #{tpu_custom_call.1} parent=1 // pred_check_branch
      %50 = sbr.rel (0) target = $region13
    $region12: #{tpu_custom_call.1} parent=1 // pred_region
      %s51 = sadd.s32 0, 0
      %p52 = scmp.lt.s32.totalorder %s51, 0
      %s53 = scalar_select %p52, %s51, 0
      %s54 = smul.u32 2, %s53
      %56 = vsyncadd [#allocation6], 0
      %s57 = smul.addr %s54, 8
      %s58 = scalar_lea.hbm %s2, %s57
      %s59 = sshll.u32 %s58, 4
      %s60 = int_to_ptr.hbm [resolvable:$true] %s59
      %s61 = sshll.u32 [#allocation7], 4
      %s62 = int_to_ptr.vmem [resolvable:$true] %s61
      %67 = dma.hbm_to_vmem [thread:$0]  %s60, 256, %s62, [#allocation6], 128, 128, 8
    $region13: #{tpu_custom_call.1} parent=1 // pred_fallthru
      _
    // Predicated region
    $region14: #{tpu_custom_call.1} parent=1 // pred_check
      _
    $region15: #{tpu_custom_call.1} parent=1 // pred_check_branch
      %69 = sbr.rel (0) target = $region17
    $region16: #{tpu_custom_call.1} parent=1 // pred_region
      %71 = dma.done [#allocation3], 256
    $region17: #{tpu_custom_call.1} parent=1 // pred_fallthru
      _
    // Predicated region
    $region18: #{tpu_custom_call.1} parent=1 // pred_check
      _
    $region19: #{tpu_custom_call.1} parent=1 // pred_check_branch
      %73 = sbr.rel (0) target = $region21
    $region20: #{tpu_custom_call.1} parent=1 // pred_region
      %75 = dma.done [#allocation6], 256
    $region21: #{tpu_custom_call.1} parent=1 // pred_fallthru
      _
    // Predicated region
    $region22: #{tpu_custom_call.1} parent=1 // pred_check
      _
    $region23: #{tpu_custom_call.1} parent=1 // pred_check_branch
      %77 = sbr.rel (0) target = $region25
    $region24: #{tpu_custom_call.1} parent=1 // pred_region
      %79 = dma.done [#allocation6], 256
    $region25: #{tpu_custom_call.1} parent=1 // pred_fallthru
      _
    %s80 = sadd.s32 0, 0
    %p81 = scmp.lt.s32.totalorder %s80, 0
    %s82 = scalar_select %p81, %s80, 0
    %s83 = smul.u32 2, %s82
    %s84 = sadd.s32 0, 0
    %p85 = scmp.lt.s32.totalorder %s84, 0
    %s86 = scalar_select %p85, %s84, 0
    %s87 = smul.u32 2, %s86
    %s88 = sadd.s32 0, 0
    %p89 = scmp.lt.s32.totalorder %s88, 0
    %s90 = scalar_select %p89, %s88, 0
    %s91 = smul.u32 2, %s90
    %p92 = scmp.eq.s32.totalorder 0, 0
    // Predicated region
    $region26: #{tpu_custom_call.1} parent=1 // pred_check
      %p93 = pneg %p92
    $region27: #{tpu_custom_call.1} parent=1 // pred_check_branch
      %95 = sbr.rel (%p93) target = $region29
    $region28: #{tpu_custom_call.1} parent=1 // pred_region
      %96 = vst [vmem:[#allocation8] sm:$0xff] 0.0
    $region29: #{tpu_custom_call.1} parent=1 // pred_fallthru
      _
    %s97 = sadd.s32 0, 0
    %s98 = smul.u32 %s97, 16
    %v99 = vld [vmem:[#allocation2] sm:$0xff]
    %v100 = vld [vmem:[#allocation2 + $0x8] sm:$0xff]
    %v101 = vld [vmem:[#allocation5] sm:$0xff]
    %v102 = vld [vmem:[#allocation5 + $0x8] sm:$0xff]
    %v103 = vsub.f32 %v99, %v101
    %v104 = vsub.f32 %v100, %v102
    %v105 = vld [vmem:[#allocation7] sm:$0xff]
    %v106 = vld [vmem:[#allocation7 + $0x8] sm:$0xff]
    %v107 = vmul.f32 %v105, %v103
    %v108 = vmul.f32 %v106, %v104
    %v109 = vmul.f32 %v107, %v103
    %v110 = vmul.f32 %v108, %v104
    %s111 = sadd.s32 %s98, 16
    %p112 = scmp.le.s32.totalorder %s111, 16
    // Predicated region
    $region30: #{tpu_custom_call.1} parent=1 // pred_check
      %p113 = pneg %p112
    $region31: #{tpu_custom_call.1} parent=1 // pred_check_branch
      %115 = sbr.rel (%p113) target = $region33
    $region32: #{tpu_custom_call.1} parent=1 // pred_region
      %v116 = vadd.f32 %v109, %v110
      %v117 = vld [vmem:[#allocation8] sm:$0xff]
      %v118 = vadd.f32 %v117, %v116
      %119 = vst [vmem:[#allocation8] sm:$0xff] %v118
    $region33: #{tpu_custom_call.1} parent=1 // pred_fallthru
      _
    %p120 = scmp.gt.s32.totalorder %s111, 16
    // Predicated region
    $region34: #{tpu_custom_call.1} parent=1 // pred_check
      %p121 = pneg %p120
    $region35: #{tpu_custom_call.1} parent=1 // pred_check_branch
      %123 = sbr.rel (%p121) target = $region37
    $region36: #{tpu_custom_call.1} parent=1 // pred_region
      %v124 = vlaneseq
      %v125 = vshrl.u32 %v124, 7
      %v126 = vadd.s32 %v125, 8
      %v127 = vstv %s98
      %v128 = vadd.s32 %v127, %v125
      %v129 = vadd.s32 %v127, %v126
      %vm130 = vcmp.lt.s32.totalorder %v128, 16
      %vm131 = vcmp.lt.s32.totalorder %v129, 16
      %v132 = vsel %vm130, %v109, 0.0
      %v133 = vsel %vm131, %v110, 0.0
      %v134 = vadd.f32 %v132, %v133
      %v135 = vld [vmem:[#allocation8] sm:$0xff]
      %v136 = vadd.f32 %v135, %v134
      %137 = vst [vmem:[#allocation8] sm:$0xff] %v136
    $region37: #{tpu_custom_call.1} parent=1 // pred_fallthru
      _
    // Predicated region
    $region38: #{tpu_custom_call.1} parent=1 // pred_check
      _
    $region39: #{tpu_custom_call.1} parent=1 // pred_check_branch
      %139 = sbr.rel (0) target = $region41
    $region40: #{tpu_custom_call.1} parent=1 // pred_region
      %141 = vsyncadd [#allocation4], 0
      %s143 = sshll.u32 [#allocation8], 4
      %s144 = int_to_ptr.vmem [resolvable:$true] %s143
      %s145 = sshll.u32 %s3, 4
      %s146 = int_to_ptr.hbm [resolvable:$true] %s145
      %148 = dma.vmem_to_hbm [thread:$0]  %s144, 128, %s146, [#allocation4]
    $region41: #{tpu_custom_call.1} parent=1 // pred_fallthru
      _
    // Predicated region
    $region42: #{tpu_custom_call.1} parent=1 // pred_check
      _
    $region43: #{tpu_custom_call.1} parent=1 // pred_check_branch
      %150 = sbr.rel (0) target = $region45
    $region44: #{tpu_custom_call.1} parent=1 // pred_region
      %152 = dma.done [#allocation4], 128
    $region45: #{tpu_custom_call.1} parent=1 // pred_fallthru
      _
    %153 = vsyncpa [#allocation3], 1
    %154 = vsyncpa [#allocation6], 1
    %155 = vsyncpa [#allocation4], 1

</llo_original>
